<compile_context>
chip_gen: v6e
topology: v6e:2x2x1
jax: 0.10.0
libtpu: 0.0.40
codegen_flags: <defaults>
</compile_context>

<pallas_src>
import functools

import jax
import jax.numpy as jnp
from jax.experimental import pallas as pl
from jax.experimental.pallas import tpu as pltpu
from jax.scipy.linalg import block_diag

TRANS_TYPE = "residual"   # config['trans_type']


def _kernel(x_ref, xadd_ref, w1c_ref, b1c_ref, w2p_ref, b2p_ref,
            we1_ref, be1_ref, we2_ref, be2_ref, out_ref):
    # ---- all K transform MLPs: two wide MXU matmuls -------------------------
    h = jnp.maximum(
        jnp.dot(x_ref[...], w1c_ref[...], preferred_element_type=jnp.float32)
        + b1c_ref[...],
        0.0)                                                   # (B, K*H1)

    # block-diag layer 2 (view-0 slot zeroed) + lane-packed x contribution:
    # one matmul + one full-vreg VPU add, no lane slicing.
    views = (jnp.dot(h, w2p_ref[...], preferred_element_type=jnp.float32)
             + b2p_ref[...]
             + xadd_ref[...])                                  # (B, (K+1)*D)

    # ---- shared encoder on all K+1 views at once (block-diagonal weights) ---
    he = jnp.maximum(
        jnp.dot(views, we1_ref[...], preferred_element_type=jnp.float32)
        + be1_ref[...],
        0.0)                                                   # (B, (K+1)*H2)

    # single lane-dense, unmasked store of the whole output slab
    out_ref[...] = (jnp.dot(he, we2_ref[...],
                            preferred_element_type=jnp.float32)
                    + be2_ref[...])                            # (B, (K+1)*Z)


def pack_params(params, num_trans):
    """One-time repacking of the per-transform / encoder weights into the
    fused + block-diagonal layout consumed by the kernel."""
    w1, b1, w2, b2, we1, be1, we2, be2 = params
    K = num_trans
    _, D, H1 = w1.shape
    H2 = we1.shape[-1]
    Z = we2.shape[-1]
    V = K + 1

    f32 = jnp.float32
    w1, b1, w2, b2 = (a.astype(f32) for a in (w1, b1, w2, b2))
    we1, be1, we2, be2 = (a.astype(f32) for a in (we1, be1, we2, be2))

    # layer 1 of all transforms, concatenated along the output axis
    w1c = jnp.transpose(w1, (1, 0, 2)).reshape(D, K * H1)       # (D, K*H1)
    b1c = b1.reshape(1, K * H1)

    # layer 2: block-diagonal, shifted right by D so the view-0 slot is zero
    w2p = jnp.concatenate(
        [jnp.zeros((K * H1, D), f32), block_diag(*w2)], axis=1)  # (K*H1, V*D)
    b2p = jnp.concatenate(
        [jnp.zeros((1, D), f32), b2.reshape(1, K * D)], axis=1)  # (1, V*D)

    # shared encoder replicated block-diagonally over the K+1 views
    we1bd = block_diag(*([we1] * V))                             # (V*D, V*H2)
    be1bd = jnp.tile(be1.reshape(1, H2), (1, V))                 # (1, V*H2)
    we2bd = block_diag(*([we2] * V))                             # (V*H2, V*Z)
    be2bd = jnp.tile(be2.reshape(1, Z), (1, V))                  # (1, V*Z)

    return (w1c, b1c, w2p, b2p, we1bd, be1bd, we2bd, be2bd)


@functools.partial(jax.jit, static_argnames=("num_trans", "trans_type"))
def tab_neutral_ad(x, packed, num_trans, trans_type=TRANS_TYPE):
    w1c, b1c, w2p, b2p, we1bd, be1bd, we2bd, be2bd = packed
    B, D = x.shape
    K = num_trans
    V = K + 1
    H1 = w1c.shape[-1] // K
    H2 = be1bd.shape[-1] // V
    Z = be2bd.shape[-1] // V

    x = x.astype(jnp.float32)
    # lane-packed per-view x contribution (built once per call, 4 KB)
    if trans_type == "residual":
        x_add = jnp.tile(x, (1, V))                               # + x in every view
    else:  # 'forward'
        x_add = jnp.concatenate(
            [x, jnp.zeros((B, K * D), jnp.float32)], axis=1)      # x only in view 0

    flops = 2 * B * (D * K * H1 + K * H1 * V * D + V * D * V * H2 + V * H2 * V * Z)
    bytes_accessed = 4 * (x.size + x_add.size
                          + sum(int(p.size) for p in packed)
                          + B * V * Z)

    vmem = pl.BlockSpec(memory_space=pltpu.MemorySpace.VMEM)
    out = pl.pallas_call(
        _kernel,
        out_shape=jax.ShapeDtypeStruct((B, V * Z), jnp.float32),
        in_specs=[vmem] * 10,
        out_specs=vmem,
        cost_estimate=pl.CostEstimate(flops=flops, transcendentals=0,
                                      bytes_accessed=bytes_accessed),
    )(x, x_add, w1c, b1c, w2p, b2p, we1bd, be1bd, we2bd, be2bd)

    # (B, (K+1)*Z) -> (B, K+1, Z): contiguous reshape, no transpose.
    return out.reshape(B, V, Z)


def _reference(x, params, num_trans, trans_type):
    w1, b1, w2, b2, we1, be1, we2, be2 = params
    B, D = x.shape
    Z = we2.shape[-1]
    views = [x]
    for i in range(num_trans):
        h = jnp.maximum(x @ w1[i] + b1[i], 0.0)
        mask = h @ w2[i] + b2[i]
        views.append(mask + x if trans_type == "residual" else mask)
    x_cat = jnp.stack(views, axis=1)                 # (B, K+1, D)
    flat = x_cat.reshape(-1, D)
    return (jnp.maximum(flat @ we1 + be1, 0.0) @ we2 + be2).reshape(
        B, num_trans + 1, Z)


if __name__ == "__main__":
    key = jax.random.PRNGKey(0)
    B, D = 8, 16          # batch, x_dim
    K = 7                 # num_trans
    H1, H2 = 32, 64       # trans / encoder hidden widths
    Z = 2 * D             # z_dim rule: x_dim < 32 -> 2 * x_dim

    ks = jax.random.split(key, 9)
    s = 0.1
    w1 = jax.random.normal(ks[0], (K, D, H1), jnp.float32) * s
    b1 = jax.random.normal(ks[1], (K, 1, H1), jnp.float32) * s
    w2 = jax.random.normal(ks[2], (K, H1, D), jnp.float32) * s
    b2 = jax.random.normal(ks[3], (K, 1, D), jnp.float32) * s
    we1 = jax.random.normal(ks[4], (D, H2), jnp.float32) * s
    be1 = jax.random.normal(ks[5], (1, H2), jnp.float32) * s
    we2 = jax.random.normal(ks[6], (H2, Z), jnp.float32) * s
    be2 = jax.random.normal(ks[7], (1, Z), jnp.float32) * s
    x = jax.random.normal(ks[8], (B, D), jnp.float32)

    params = (w1, b1, w2, b2, we1, be1, we2, be2)
    packed = jax.tree_util.tree_map(jax.block_until_ready,
                                    pack_params(params, K))

    ok = True
    for trans_type in ("residual", "forward"):
        zs = jax.block_until_ready(
            tab_neutral_ad(x, packed, K, trans_type=trans_type))
        ref = _reference(x, params, K, trans_type)
        ok &= zs.shape == (B, K + 1, Z)
        ok &= bool(jnp.allclose(zs, ref, atol=1e-5, rtol=1e-5))

    assert ok
    print("KERNEL_OK")
</pallas_src>

<mosaic_0001>
module attributes {stable_mosaic.version = 11 : i64} {
  func.func @_kernel(%arg0: memref<8x16xf32, #tpu.memory_space<vmem>>, %arg1: memref<8x128xf32, #tpu.memory_space<vmem>>, %arg2: memref<16x224xf32, #tpu.memory_space<vmem>>, %arg3: memref<1x224xf32, #tpu.memory_space<vmem>>, %arg4: memref<224x128xf32, #tpu.memory_space<vmem>>, %arg5: memref<1x128xf32, #tpu.memory_space<vmem>>, %arg6: memref<128x512xf32, #tpu.memory_space<vmem>>, %arg7: memref<1x512xf32, #tpu.memory_space<vmem>>, %arg8: memref<512x256xf32, #tpu.memory_space<vmem>>, %arg9: memref<1x256xf32, #tpu.memory_space<vmem>>, %arg10: memref<8x256xf32, #tpu.memory_space<vmem>>) attributes {dimension_semantics = [], scalar_prefetch = 0 : i64, scratch_operands = 0 : i64, tpu.core_type = #tpu.core_type<tc>} {
    %c0 = arith.constant 0 : index
    %c0_0 = arith.constant 0 : index
    %0 = vector.load %arg0[%c0, %c0_0] : memref<8x16xf32, #tpu.memory_space<vmem>>, vector<8x16xf32>
    %c0_1 = arith.constant 0 : index
    %c0_2 = arith.constant 0 : index
    %1 = vector.load %arg2[%c0_1, %c0_2] : memref<16x224xf32, #tpu.memory_space<vmem>>, vector<16x224xf32>
    %cst = arith.constant dense<0.000000e+00> : vector<8x224xf32>
    %2 = tpu.matmul %0, %1, %cst {dimension_numbers = #tpu.dot_dimension_numbers<[1], [0], [0], [1], [0, 0, 1, 1], [], []>} : vector<8x16xf32>, vector<16x224xf32>, vector<8x224xf32> -> vector<8x224xf32>
    %c0_3 = arith.constant 0 : index
    %c0_4 = arith.constant 0 : index
    %3 = vector.load %arg3[%c0_3, %c0_4] : memref<1x224xf32, #tpu.memory_space<vmem>>, vector<1x224xf32>
    %4 = vector.broadcast %3 : vector<1x224xf32> to vector<8x224xf32>
    %5 = arith.addf %2, %4 : vector<8x224xf32>
    %cst_5 = arith.constant 0.000000e+00 : f32
    %6 = vector.broadcast %cst_5 : f32 to vector<8x224xf32>
    %7 = arith.maximumf %5, %6 : vector<8x224xf32>
    %c0_6 = arith.constant 0 : index
    %c0_7 = arith.constant 0 : index
    %8 = vector.load %arg4[%c0_6, %c0_7] : memref<224x128xf32, #tpu.memory_space<vmem>>, vector<224x128xf32>
    %cst_8 = arith.constant dense<0.000000e+00> : vector<8x128xf32>
    %9 = tpu.matmul %7, %8, %cst_8 {dimension_numbers = #tpu.dot_dimension_numbers<[1], [0], [0], [1], [0, 0, 1, 1], [], []>} : vector<8x224xf32>, vector<224x128xf32>, vector<8x128xf32> -> vector<8x128xf32>
    %c0_9 = arith.constant 0 : index
    %c0_10 = arith.constant 0 : index
    %10 = vector.load %arg5[%c0_9, %c0_10] : memref<1x128xf32, #tpu.memory_space<vmem>>, vector<1x128xf32>
    %11 = vector.broadcast %10 : vector<1x128xf32> to vector<8x128xf32>
    %12 = arith.addf %9, %11 : vector<8x128xf32>
    %c0_11 = arith.constant 0 : index
    %c0_12 = arith.constant 0 : index
    %13 = vector.load %arg1[%c0_11, %c0_12] : memref<8x128xf32, #tpu.memory_space<vmem>>, vector<8x128xf32>
    %14 = arith.addf %12, %13 : vector<8x128xf32>
    %c0_13 = arith.constant 0 : index
    %c0_14 = arith.constant 0 : index
    %15 = vector.load %arg6[%c0_13, %c0_14] : memref<128x512xf32, #tpu.memory_space<vmem>>, vector<128x512xf32>
    %cst_15 = arith.constant dense<0.000000e+00> : vector<8x512xf32>
    %16 = tpu.matmul %14, %15, %cst_15 {dimension_numbers = #tpu.dot_dimension_numbers<[1], [0], [0], [1], [0, 0, 1, 1], [], []>} : vector<8x128xf32>, vector<128x512xf32>, vector<8x512xf32> -> vector<8x512xf32>
    %c0_16 = arith.constant 0 : index
    %c0_17 = arith.constant 0 : index
    %17 = vector.load %arg7[%c0_16, %c0_17] : memref<1x512xf32, #tpu.memory_space<vmem>>, vector<1x512xf32>
    %18 = vector.broadcast %17 : vector<1x512xf32> to vector<8x512xf32>
    %19 = arith.addf %16, %18 : vector<8x512xf32>
    %cst_18 = arith.constant 0.000000e+00 : f32
    %20 = vector.broadcast %cst_18 : f32 to vector<8x512xf32>
    %21 = arith.maximumf %19, %20 : vector<8x512xf32>
    %c0_19 = arith.constant 0 : index
    %c0_20 = arith.constant 0 : index
    %22 = vector.load %arg8[%c0_19, %c0_20] : memref<512x256xf32, #tpu.memory_space<vmem>>, vector<512x256xf32>
    %cst_21 = arith.constant dense<0.000000e+00> : vector<8x256xf32>
    %23 = tpu.matmul %21, %22, %cst_21 {dimension_numbers = #tpu.dot_dimension_numbers<[1], [0], [0], [1], [0, 0, 1, 1], [], []>} : vector<8x512xf32>, vector<512x256xf32>, vector<8x256xf32> -> vector<8x256xf32>
    %c0_22 = arith.constant 0 : index
    %c0_23 = arith.constant 0 : index
    %24 = vector.load %arg9[%c0_22, %c0_23] : memref<1x256xf32, #tpu.memory_space<vmem>>, vector<1x256xf32>
    %25 = vector.broadcast %24 : vector<1x256xf32> to vector<8x256xf32>
    %26 = arith.addf %23, %25 : vector<8x256xf32>
    %c0_24 = arith.constant 0 : index
    %c0_25 = arith.constant 0 : index
    %27 = vector.load %arg10[%c0_24, %c0_25] : memref<8x256xf32, #tpu.memory_space<vmem>>, vector<8x256xf32>
    tpu.vector_store %arg10[%c0_24, %c0_25], %26 {strides = array<i32>} : memref<8x256xf32, #tpu.memory_space<vmem>>, vector<8x256xf32>,
    return
  }
}

</mosaic_0001>

<llo_original>
// kernel: tile.9
$region0: #{tile.9}
  %s0 = inlined_call_operand.vmem [shape: f32[8,8,16], index: 0, kind: input, shape index: {}]
  %s1 = inlined_call_operand.vmem [shape: f32[8,128], index: 1, kind: output, shape index: {}]
  %v2 = vld [vmem:[%s0] ss:$8 sm:$0xf]
  %v3 = vld [vmem:[%s0] ss:$8 sm:$0xf0]
  %vm4 = vcmask 1047556
  %v5 = vsel %vm4, %v3, %v2
  %vm6 = vcmask 130048
  %7 = vst.msk [vmem:[%s1] sm:$0xff] %vm6, %v5
  %s8 = scalar_lea.vmem %s0, 7
  %v9 = vld [vmem:[%s8] ss:$8 sm:$0xf]
  %s10 = scalar_lea.vmem %s0, 7
  %v11 = vld [vmem:[%s10] ss:$8 sm:$0xf0]
  %vm12 = vcmask 1047556
  %v13 = vsel %vm12, %v11, %v9
  %14 = vrot.lane.b32.xlu0 %v13, 112
  %v15 = vpop.permute.xlu0 %14
  %vm16 = vcmask 1048448
  %17 = vst.msk [vmem:[%s1] sm:$0xff] %vm16, %v15
  %s18 = scalar_lea.vmem %s0, 6
  %v19 = vld [vmem:[%s18] ss:$8 sm:$0xf]
  %s20 = scalar_lea.vmem %s0, 6
  %v21 = vld [vmem:[%s20] ss:$8 sm:$0xf0]
  %vm22 = vcmask 1047556
  %v23 = vsel %vm22, %v21, %v19
  %24 = vrot.lane.b32.xlu0 %v23, 96
  %v25 = vpop.permute.xlu0 %24
  %vm26 = vcmask 917248
  %27 = vst.msk [vmem:[%s1] sm:$0xff] %vm26, %v25
  %s28 = scalar_lea.vmem %s0, 5
  %v29 = vld [vmem:[%s28] ss:$8 sm:$0xf]
  %s30 = scalar_lea.vmem %s0, 5
  %v31 = vld [vmem:[%s30] ss:$8 sm:$0xf0]
  %vm32 = vcmask 1047556
  %v33 = vsel %vm32, %v31, %v29
  %34 = vrot.lane.b32.xlu0 %v33, 80
  %v35 = vpop.permute.xlu0 %34
  %vm36 = vcmask 786048
  %37 = vst.msk [vmem:[%s1] sm:$0xff] %vm36, %v35
  %s38 = scalar_lea.vmem %s0, 4
  %v39 = vld [vmem:[%s38] ss:$8 sm:$0xf]
  %s40 = scalar_lea.vmem %s0, 4
  %v41 = vld [vmem:[%s40] ss:$8 sm:$0xf0]
  %vm42 = vcmask 1047556
  %v43 = vsel %vm42, %v41, %v39
  %44 = vrot.lane.b32.xlu0 %v43, 64
  %v45 = vpop.permute.xlu0 %44
  %vm46 = vcmask 654848
  %47 = vst.msk [vmem:[%s1] sm:$0xff] %vm46, %v45
  %s48 = scalar_lea.vmem %s0, 3
  %v49 = vld [vmem:[%s48] ss:$8 sm:$0xf]
  %s50 = scalar_lea.vmem %s0, 3
  %v51 = vld [vmem:[%s50] ss:$8 sm:$0xf0]
  %vm52 = vcmask 1047556
  %v53 = vsel %vm52, %v51, %v49
  %54 = vrot.lane.b32.xlu0 %v53, 48
  %v55 = vpop.permute.xlu0 %54
  %vm56 = vcmask 523648
  %57 = vst.msk [vmem:[%s1] sm:$0xff] %vm56, %v55
  %s58 = scalar_lea.vmem %s0, 2
  %v59 = vld [vmem:[%s58] ss:$8 sm:$0xf]
  %s60 = scalar_lea.vmem %s0, 2
  %v61 = vld [vmem:[%s60] ss:$8 sm:$0xf0]
  %vm62 = vcmask 1047556
  %v63 = vsel %vm62, %v61, %v59
  %64 = vrot.lane.b32.xlu0 %v63, 32
  %v65 = vpop.permute.xlu0 %64
  %vm66 = vcmask 392448
  %67 = vst.msk [vmem:[%s1] sm:$0xff] %vm66, %v65
  %s68 = scalar_lea.vmem %s0, 1
  %v69 = vld [vmem:[%s68] ss:$8 sm:$0xf]
  %s70 = scalar_lea.vmem %s0, 1
  %v71 = vld [vmem:[%s70] ss:$8 sm:$0xf0]
  %vm72 = vcmask 1047556
  %v73 = vsel %vm72, %v71, %v69
  %74 = vrot.lane.b32.xlu0 %v73, 16
  %v75 = vpop.permute.xlu0 %74
  %vm76 = vcmask 261248
  %77 = vst.msk [vmem:[%s1] sm:$0xff] %vm76, %v75

// kernel: tab_neutral_ad.1
$region0: #{tab_neutral_ad.1}
  #allocation0 [shape = 'u32[]', space=smem, size = 0x4, offset = 0x4, fixed_abs, tag = 'smem constant byte address 0x4 - core index']
  #allocation1 [shape = 'u32[144,128]{1,0:T(1,128)}', space=vmem, size = 0x12000, scoped, tag = 'internal scratch']
  %s0 = inlined_call_operand.vmem [shape: f32[8,16], index: 0, kind: input, shape index: {}]
  %s1 = inlined_call_operand.vmem [shape: f32[8,128], index: 1, kind: input, shape index: {}]
  %s2 = inlined_call_operand.vmem [shape: f32[16,224], index: 2, kind: input, shape index: {}]
  %s3 = inlined_call_operand.vmem [shape: f32[1,224], index: 3, kind: input, shape index: {}]
  %s4 = inlined_call_operand.hbm [shape: f32[224,128], index: 4, kind: input, shape index: {}]
  %s5 = inlined_call_operand.vmem [shape: f32[1,128], index: 5, kind: input, shape index: {}]
  %s6 = inlined_call_operand.hbm [shape: f32[128,512], index: 6, kind: input, shape index: {}]
  %s7 = inlined_call_operand.vmem [shape: f32[1,512], index: 7, kind: input, shape index: {}]
  %s8 = inlined_call_operand.hbm [shape: f32[512,256], index: 8, kind: input, shape index: {}]
  %s9 = inlined_call_operand.vmem [shape: f32[1,256], index: 9, kind: input, shape index: {}]
  %s10 = inlined_call_operand.vmem [shape: f32[8,256], index: 10, kind: output, shape index: {}]
  %s11 = sld [smem:[#allocation0]]
  $region62: #{tab_neutral_ad.1} parent=0
    _
  %s13 = ssub.s32 1, %s11
  %s14 = scalar_select 0, %s13, %s11
  $region1: #{tab_neutral_ad.1} parent=0
    #allocation2 [shape = 'u8[114688]{0}', space=vmem, size = 0x1c000, scoped, tag = 'input window, operand 4, single buffered']
    #allocation3 [shape = 's32[1]{0}', space=sflag, size = 0x4, scoped, tag = 'scoped memory for tab_neutral_ad.1']
    #allocation4 [shape = 'u8[262144]{0}', space=vmem, size = 0x40000, scoped, tag = 'input window, operand 6, single buffered']
    #allocation5 [shape = 's32[1]{0}', space=sflag, size = 0x4, scoped, tag = 'scoped memory for tab_neutral_ad.1']
    #allocation6 [shape = 'u8[524288]{0}', space=vmem, size = 0x80000, scoped, tag = 'input window, operand 8, single buffered']
    %15 = vsyncpa [#allocation3], 0
    %16 = vsyncpa [#allocation5], 0
    // Predicated region
    $region2: #{tab_neutral_ad.1} parent=1 // pred_check
      _
    $region3: #{tab_neutral_ad.1} parent=1 // pred_check_branch
      %18 = sbr.rel (0) target = $region5
    $region4: #{tab_neutral_ad.1} parent=1 // pred_region
      _
    $region5: #{tab_neutral_ad.1} parent=1 // pred_fallthru
      _
    // Predicated region
    $region6: #{tab_neutral_ad.1} parent=1 // pred_check
      _
    $region7: #{tab_neutral_ad.1} parent=1 // pred_check_branch
      %20 = sbr.rel (0) target = $region9
    $region8: #{tab_neutral_ad.1} parent=1 // pred_region
      _
    $region9: #{tab_neutral_ad.1} parent=1 // pred_fallthru
      _
    // Predicated region
    $region10: #{tab_neutral_ad.1} parent=1 // pred_check
      _
    $region11: #{tab_neutral_ad.1} parent=1 // pred_check_branch
      %22 = sbr.rel (0) target = $region13
    $region12: #{tab_neutral_ad.1} parent=1 // pred_region
      _
    $region13: #{tab_neutral_ad.1} parent=1 // pred_fallthru
      _
    // Predicated region
    $region14: #{tab_neutral_ad.1} parent=1 // pred_check
      _
    $region15: #{tab_neutral_ad.1} parent=1 // pred_check_branch
      %24 = sbr.rel (0) target = $region17
    $region16: #{tab_neutral_ad.1} parent=1 // pred_region
      _
    $region17: #{tab_neutral_ad.1} parent=1 // pred_fallthru
      _
    // Predicated region
    $region18: #{tab_neutral_ad.1} parent=1 // pred_check
      _
    $region19: #{tab_neutral_ad.1} parent=1 // pred_check_branch
      %26 = sbr.rel (0) target = $region21
    $region20: #{tab_neutral_ad.1} parent=1 // pred_region
      %s28 = ssub.s32 3584, 3584
      %29 = vsyncadd [#allocation3], %s28
      %s30 = sshll.u32 [#allocation2], 4
      %s31 = int_to_ptr.vmem [resolvable:$true] %s30
      %36 = dma.hbm_to_vmem [thread:$0]  %s4, 3584, %s31, [#allocation3], 128, 128, 8
    $region21: #{tab_neutral_ad.1} parent=1 // pred_fallthru
      _
    // Predicated region
    $region22: #{tab_neutral_ad.1} parent=1 // pred_check
      _
    $region23: #{tab_neutral_ad.1} parent=1 // pred_check_branch
      %38 = sbr.rel (0) target = $region25
    $region24: #{tab_neutral_ad.1} parent=1 // pred_region
      _
    $region25: #{tab_neutral_ad.1} parent=1 // pred_fallthru
      _
    // Predicated region
    $region26: #{tab_neutral_ad.1} parent=1 // pred_check
      _
    $region27: #{tab_neutral_ad.1} parent=1 // pred_check_branch
      %40 = sbr.rel (0) target = $region29
    $region28: #{tab_neutral_ad.1} parent=1 // pred_region
      %s42 = ssub.s32 8192, 8192
      %43 = vsyncadd [#allocation5], %s42
      %s44 = sshll.u32 [#allocation4], 4
      %s45 = int_to_ptr.vmem [resolvable:$true] %s44
      %50 = dma.hbm_to_vmem [thread:$0]  %s6, 8192, %s45, [#allocation5], 512, 512, 32
    $region29: #{tab_neutral_ad.1} parent=1 // pred_fallthru
      _
    // Predicated region
    $region30: #{tab_neutral_ad.1} parent=1 // pred_check
      _
    $region31: #{tab_neutral_ad.1} parent=1 // pred_check_branch
      %52 = sbr.rel (0) target = $region33
    $region32: #{tab_neutral_ad.1} parent=1 // pred_region
      _
    $region33: #{tab_neutral_ad.1} parent=1 // pred_fallthru
      _
    // Predicated region
    $region34: #{tab_neutral_ad.1} parent=1 // pred_check
      _
    $region35: #{tab_neutral_ad.1} parent=1 // pred_check_branch
      %54 = sbr.rel (0) target = $region37
    $region36: #{tab_neutral_ad.1} parent=1 // pred_region
      %s56 = ssub.s32 16384, 16384
      %57 = vsyncadd [#allocation5], %s56
      %s58 = sshll.u32 [#allocation6], 4
      %s59 = int_to_ptr.vmem [resolvable:$true] %s58
      %64 = dma.hbm_to_vmem [thread:$0]  %s8, 16384, %s59, [#allocation5], 256, 256, 16
    $region37: #{tab_neutral_ad.1} parent=1 // pred_fallthru
      _
    // Predicated region
    $region38: #{tab_neutral_ad.1} parent=1 // pred_check
      _
    $region39: #{tab_neutral_ad.1} parent=1 // pred_check_branch
      %66 = sbr.rel (0) target = $region41
    $region40: #{tab_neutral_ad.1} parent=1 // pred_region
      _
    $region41: #{tab_neutral_ad.1} parent=1 // pred_fallthru
      _
    // Predicated region
    $region42: #{tab_neutral_ad.1} parent=1 // pred_check
      _
    $region43: #{tab_neutral_ad.1} parent=1 // pred_check_branch
      %68 = sbr.rel (0) target = $region45
    $region44: #{tab_neutral_ad.1} parent=1 // pred_region
      %69 = dma.done [#allocation3], 3584
    $region45: #{tab_neutral_ad.1} parent=1 // pred_fallthru
      _
    // Predicated region
    $region46: #{tab_neutral_ad.1} parent=1 // pred_check
      _
    $region47: #{tab_neutral_ad.1} parent=1 // pred_check_branch
      %71 = sbr.rel (0) target = $region49
    $region48: #{tab_neutral_ad.1} parent=1 // pred_region
      %72 = dma.done [#allocation5], 8192
    $region49: #{tab_neutral_ad.1} parent=1 // pred_fallthru
      _
    // Predicated region
    $region50: #{tab_neutral_ad.1} parent=1 // pred_check
      _
    $region51: #{tab_neutral_ad.1} parent=1 // pred_check_branch
      %74 = sbr.rel (0) target = $region53
    $region52: #{tab_neutral_ad.1} parent=1 // pred_region
      %75 = dma.done [#allocation5], 16384
    $region53: #{tab_neutral_ad.1} parent=1 // pred_fallthru
      _
    %v76 = vld [vmem:[%s0] sm:$0xff]
    %v77 = vld [vmem:[%s2] sm:$0xff]
    %v78 = vld [vmem:[%s2 + $0x8] sm:$0xff]
    %v79 = vld [vmem:[%s2 + $0x10] sm:$0xff]
    %v80 = vld [vmem:[%s2 + $0x18] sm:$0xff]
    %v81 = vld [vmem:[%s3] sm:$0x3]
    %v83 = vlaneseq
    %v84 = vshrl.u32 %v83, 7
    %v85 = vsub.s32 0, %v84
    %v86 = vrot.slane %v81, %v85
    %v87 = vlaneseq
    %v88 = vshrl.u32 %v87, 7
    %v89 = vsub.s32 1, %v88
    %v90 = vrot.slane %v81, %v89
    %vm93 = vcmask 130048
    %v95 = vsel %vm93, %v76, 0
    %97 = vmatprep.subr.mxu0 0.0
    %98 = vmatpush1.msra.mxu0 0.0
    %99 = vmatprep.subr.mxu0 0.0
    %100 = vmatpush1.msra.mxu0 0.0
    %101 = vmatprep.subr.mxu0 0.0
    %102 = vmatpush1.msra.mxu0 0.0
    %103 = vmatprep.subr.mxu0 0.0
    %104 = vmatpush1.msra.mxu0 0.0
    %105 = vmatprep.subr.mxu0 0.0
    %106 = vmatpush1.msra.mxu0 0.0
    %107 = vmatprep.subr.mxu0 0.0
    %108 = vmatpush1.msra.mxu0 0.0
    %109 = vmatprep.subr.mxu0 0.0
    %110 = vmatpush1.msra.mxu0 0.0
    %111 = vmatprep.subr.mxu0 0.0
    %112 = vmatpush1.msra.mxu0 0.0
    %113 = vmatprep.subr.mxu0 0.0
    %114 = vmatpush1.msra.mxu0 0.0
    %115 = vmatprep.subr.mxu0 0.0
    %116 = vmatpush1.msra.mxu0 0.0
    %117 = vmatprep.subr.mxu0 0.0
    %118 = vmatpush1.msra.mxu0 0.0
    %119 = vmatprep.subr.mxu0 0.0
    %120 = vmatpush1.msra.mxu0 0.0
    %121 = vmatprep.subr.mxu0 0.0
    %122 = vmatpush1.msra.mxu0 0.0
    %123 = vmatprep.subr.mxu0 0.0
    %124 = vmatpush1.msra.mxu0 0.0
    %125 = vmatprep.subr.mxu0 %v80
    %126 = vmatpush1.msra.mxu0 %v79
    %127 = vmatprep.subr.mxu0 %v78
    %128 = vmatpush1.msra.mxu0 %v77
    %129 = vmatprep.subr.mxu0 0.0
    %130 = vmatpush2.msra.mxu0 0.0
    %131 = vmatprep.subr.mxu0 0.0
    %132 = vmatpush2.msra.mxu0 0.0
    %133 = vmatprep.subr.mxu0 0.0
    %134 = vmatpush2.msra.mxu0 0.0
    %135 = vmatprep.subr.mxu0 0.0
    %136 = vmatpush2.msra.mxu0 0.0
    %137 = vmatprep.subr.mxu0 0.0
    %138 = vmatpush2.msra.mxu0 0.0
    %139 = vmatprep.subr.mxu0 0.0
    %140 = vmatpush2.msra.mxu0 0.0
    %141 = vmatprep.subr.mxu0 0.0
    %142 = vmatpush2.msra.mxu0 0.0
    %143 = vmatprep.subr.mxu0 0.0
    %144 = vmatpush2.msra.mxu0 0.0
    %145 = vmatprep.subr.mxu0 0.0
    %146 = vmatpush2.msra.mxu0 0.0
    %147 = vmatprep.subr.mxu0 0.0
    %148 = vmatpush2.msra.mxu0 0.0
    %149 = vmatprep.subr.mxu0 0.0
    %150 = vmatpush2.msra.mxu0 0.0
    %151 = vmatprep.subr.mxu0 0.0
    %152 = vmatpush2.msra.mxu0 0.0
    %153 = vmatprep.subr.mxu0 0.0
    %154 = vmatpush2.msra.mxu0 0.0
    %155 = vmatprep.subr.mxu0 0.0
    %156 = vmatpush2.msra.mxu0 0.0
    %157 = vmatprep.subr.mxu0 0.0
    %158 = vmatpush2.msra.mxu0 0.0
    %159 = vmatprep.subr.mxu0 0.0
    %160 = vmatpush2.msra.mxu0 0.0
    %161 = vmatprep.mubr.f32.mxu0 0.0
    %162 = vmatmul.mubr.f32.gmra.mxu0 %v95
    %v163 = vpop.f32.mrf.mxu0
    %v164 = vadd.f32 %v86, %v163
    %v165 = vpop.f32.mrf.mxu0
    %v166 = vadd.f32 %v90, %v165
    %167 = vdwg.mxu0
    %v168 = vmax.f32 %v164, 0.0
    %v169 = vmax.f32 %v166, 0.0
    %v170 = vld [vmem:[#allocation2] sm:$0xff]
    %v171 = vld [vmem:[#allocation2 + $0x8] sm:$0xff]
    %v172 = vld [vmem:[#allocation2 + $0x10] sm:$0xff]
    %v173 = vld [vmem:[#allocation2 + $0x18] sm:$0xff]
    %v174 = vld [vmem:[#allocation2 + $0x20] sm:$0xff]
    %v175 = vld [vmem:[#allocation2 + $0x28] sm:$0xff]
    %v176 = vld [vmem:[#allocation2 + $0x30] sm:$0xff]
    %v177 = vld [vmem:[#allocation2 + $0x38] sm:$0xff]
    %v178 = vld [vmem:[#allocation2 + $0x40] sm:$0xff]
    %v179 = vld [vmem:[#allocation2 + $0x48] sm:$0xff]
    %v180 = vld [vmem:[#allocation2 + $0x50] sm:$0xff]
    %v181 = vld [vmem:[#allocation2 + $0x58] sm:$0xff]
    %v182 = vld [vmem:[#allocation2 + $0x60] sm:$0xff]
    %v183 = vld [vmem:[#allocation2 + $0x68] sm:$0xff]
    %v184 = vld [vmem:[#allocation2 + $0x70] sm:$0xff]
    %v185 = vld [vmem:[#allocation2 + $0x78] sm:$0xff]
    %v186 = vld [vmem:[#allocation2 + $0x80] sm:$0xff]
    %v187 = vld [vmem:[#allocation2 + $0x88] sm:$0xff]
    %v188 = vld [vmem:[#allocation2 + $0x90] sm:$0xff]
    %v189 = vld [vmem:[#allocation2 + $0x98] sm:$0xff]
    %v190 = vld [vmem:[#allocation2 + $0xa0] sm:$0xff]
    %v191 = vld [vmem:[#allocation2 + $0xa8] sm:$0xff]
    %v192 = vld [vmem:[#allocation2 + $0xb0] sm:$0xff]
    %v193 = vld [vmem:[#allocation2 + $0xb8] sm:$0xff]
    %v194 = vld [vmem:[#allocation2 + $0xc0] sm:$0xff]
    %v195 = vld [vmem:[#allocation2 + $0xc8] sm:$0xff]
    %v196 = vld [vmem:[#allocation2 + $0xd0] sm:$0xff]
    %v197 = vld [vmem:[#allocation2 + $0xd8] sm:$0xff]
    %v198 = vld [vmem:[%s5] sm:$0x1]
    %v200 = vlaneseq
    %v201 = vshrl.u32 %v200, 7
    %v202 = vsub.s32 0, %v201
    %v203 = vrot.slane %v198, %v202
    %vm205 = vcmask 785408
    %v207 = vsel %vm205, %v169, 0
    %209 = vmatprep.subr.mxu0 0.0
    %210 = vmatpush1.msra.mxu0 %v185
    %211 = vmatprep.subr.mxu0 0.0
    %212 = vmatpush1.msra.mxu0 %v184
    %213 = vmatprep.subr.mxu0 0.0
    %214 = vmatpush1.msra.mxu0 %v183
    %215 = vmatprep.subr.mxu0 0.0
    %216 = vmatpush1.msra.mxu0 %v182
    %217 = vmatprep.subr.mxu0 0.0
    %218 = vmatpush1.msra.mxu0 %v181
    %219 = vmatprep.subr.mxu0 0.0
    %220 = vmatpush1.msra.mxu0 %v180
    %221 = vmatprep.subr.mxu0 0.0
    %222 = vmatpush1.msra.mxu0 %v179
    %223 = vmatprep.subr.mxu0 0.0
    %224 = vmatpush1.msra.mxu0 %v178
    %225 = vmatprep.subr.mxu0 0.0
    %226 = vmatpush1.msra.mxu0 %v177
    %227 = vmatprep.subr.mxu0 0.0
    %228 = vmatpush1.msra.mxu0 %v176
    %229 = vmatprep.subr.mxu0 0.0
    %230 = vmatpush1.msra.mxu0 %v175
    %231 = vmatprep.subr.mxu0 0.0
    %232 = vmatpush1.msra.mxu0 %v174
    %233 = vmatprep.subr.mxu0 0.0
    %234 = vmatpush1.msra.mxu0 %v173
    %235 = vmatprep.subr.mxu0 0.0
    %236 = vmatpush1.msra.mxu0 %v172
    %237 = vmatprep.subr.mxu0 0.0
    %238 = vmatpush1.msra.mxu0 %v171
    %239 = vmatprep.subr.mxu0 0.0
    %240 = vmatpush1.msra.mxu0 %v170
    %241 = vmatprep.subr.mxu0 0.0
    %242 = vmatpush2.msra.mxu0 0.0
    %243 = vmatprep.subr.mxu0 0.0
    %244 = vmatpush2.msra.mxu0 0.0
    %245 = vmatprep.subr.mxu0 0.0
    %246 = vmatpush2.msra.mxu0 0.0
    %247 = vmatprep.subr.mxu0 0.0
    %248 = vmatpush2.msra.mxu0 0.0
    %249 = vmatprep.subr.mxu0 0.0
    %250 = vmatpush2.msra.mxu0 %v197
    %251 = vmatprep.subr.mxu0 0.0
    %252 = vmatpush2.msra.mxu0 %v196
    %253 = vmatprep.subr.mxu0 0.0
    %254 = vmatpush2.msra.mxu0 %v195
    %255 = vmatprep.subr.mxu0 0.0
    %256 = vmatpush2.msra.mxu0 %v194
    %257 = vmatprep.subr.mxu0 0.0
    %258 = vmatpush2.msra.mxu0 %v193
    %259 = vmatprep.subr.mxu0 0.0
    %260 = vmatpush2.msra.mxu0 %v192
    %261 = vmatprep.subr.mxu0 0.0
    %262 = vmatpush2.msra.mxu0 %v191
    %263 = vmatprep.subr.mxu0 0.0
    %264 = vmatpush2.msra.mxu0 %v190
    %265 = vmatprep.subr.mxu0 0.0
    %266 = vmatpush2.msra.mxu0 %v189
    %267 = vmatprep.subr.mxu0 0.0
    %268 = vmatpush2.msra.mxu0 %v188
    %269 = vmatprep.subr.mxu0 0.0
    %270 = vmatpush2.msra.mxu0 %v187
    %271 = vmatprep.subr.mxu0 0.0
    %272 = vmatpush2.msra.mxu0 %v186
    %273 = vmatprep.mubr.f32.mxu0 %v207
    %274 = vmatmul.mubr.f32.gmra.mxu0 %v168
    %v275 = vpop.f32.mrf.mxu0
    %v276 = vadd.f32 %v203, %v275
    %v277 = vpop.f32.mrf.mxu0
    %278 = vdwg.mxu0
    %v279 = vld [vmem:[%s1] sm:$0xff]
    %v280 = vadd.f32 %v276, %v279
    %v281 = vld [vmem:[#allocation4] sm:$0xff]
    %v282 = vld [vmem:[#allocation4 + $0x8] sm:$0xff]
    %v283 = vld [vmem:[#allocation4 + $0x10] sm:$0xff]
    %v284 = vld [vmem:[#allocation4 + $0x18] sm:$0xff]
    %v285 = vld [vmem:[#allocation4 + $0x20] sm:$0xff]
    %v286 = vld [vmem:[#allocation4 + $0x28] sm:$0xff]
    %v287 = vld [vmem:[#allocation4 + $0x30] sm:$0xff]
    %v288 = vld [vmem:[#allocation4 + $0x38] sm:$0xff]
    %v289 = vld [vmem:[#allocation4 + $0x40] sm:$0xff]
    %v290 = vld [vmem:[#allocation4 + $0x48] sm:$0xff]
    %v291 = vld [vmem:[#allocation4 + $0x50] sm:$0xff]
    %v292 = vld [vmem:[#allocation4 + $0x58] sm:$0xff]
    %v293 = vld [vmem:[#allocation4 + $0x60] sm:$0xff]
    %v294 = vld [vmem:[#allocation4 + $0x68] sm:$0xff]
    %v295 = vld [vmem:[#allocation4 + $0x70] sm:$0xff]
    %v296 = vld [vmem:[#allocation4 + $0x78] sm:$0xff]
    %v297 = vld [vmem:[#allocation4 + $0x80] sm:$0xff]
    %v298 = vld [vmem:[#allocation4 + $0x88] sm:$0xff]
    %v299 = vld [vmem:[#allocation4 + $0x90] sm:$0xff]
    %v300 = vld [vmem:[#allocation4 + $0x98] sm:$0xff]
    %v301 = vld [vmem:[#allocation4 + $0xa0] sm:$0xff]
    %v302 = vld [vmem:[#allocation4 + $0xa8] sm:$0xff]
    %v303 = vld [vmem:[#allocation4 + $0xb0] sm:$0xff]
    %v304 = vld [vmem:[#allocation4 + $0xb8] sm:$0xff]
    %v305 = vld [vmem:[#allocation4 + $0xc0] sm:$0xff]
    %v306 = vld [vmem:[#allocation4 + $0xc8] sm:$0xff]
    %v307 = vld [vmem:[#allocation4 + $0xd0] sm:$0xff]
    %v308 = vld [vmem:[#allocation4 + $0xd8] sm:$0xff]
    %v309 = vld [vmem:[#allocation4 + $0xe0] sm:$0xff]
    %v310 = vld [vmem:[#allocation4 + $0xe8] sm:$0xff]
    %v311 = vld [vmem:[#allocation4 + $0xf0] sm:$0xff]
    %v312 = vld [vmem:[#allocation4 + $0xf8] sm:$0xff]
    %v313 = vld [vmem:[#allocation4 + $0x100] sm:$0xff]
    %v314 = vld [vmem:[#allocation4 + $0x108] sm:$0xff]
    %v315 = vld [vmem:[#allocation4 + $0x110] sm:$0xff]
    %v316 = vld [vmem:[#allocation4 + $0x118] sm:$0xff]
    %v317 = vld [vmem:[#allocation4 + $0x120] sm:$0xff]
    %v318 = vld [vmem:[#allocation4 + $0x128] sm:$0xff]
    %v319 = vld [vmem:[#allocation4 + $0x130] sm:$0xff]
    %v320 = vld [vmem:[#allocation4 + $0x138] sm:$0xff]
    %v321 = vld [vmem:[#allocation4 + $0x140] sm:$0xff]
    %v322 = vld [vmem:[#allocation4 + $0x148] sm:$0xff]
    %v323 = vld [vmem:[#allocation4 + $0x150] sm:$0xff]
    %v324 = vld [vmem:[#allocation4 + $0x158] sm:$0xff]
    %v325 = vld [vmem:[#allocation4 + $0x160] sm:$0xff]
    %v326 = vld [vmem:[#allocation4 + $0x168] sm:$0xff]
    %v327 = vld [vmem:[#allocation4 + $0x170] sm:$0xff]
    %v328 = vld [vmem:[#allocation4 + $0x178] sm:$0xff]
    %v329 = vld [vmem:[#allocation4 + $0x180] sm:$0xff]
    %v330 = vld [vmem:[#allocation4 + $0x188] sm:$0xff]
    %v331 = vld [vmem:[#allocation4 + $0x190] sm:$0xff]
    %v332 = vld [vmem:[#allocation4 + $0x198] sm:$0xff]
    %v333 = vld [vmem:[#allocation4 + $0x1a0] sm:$0xff]
    %v334 = vld [vmem:[#allocation4 + $0x1a8] sm:$0xff]
    %v335 = vld [vmem:[#allocation4 + $0x1b0] sm:$0xff]
    %v336 = vld [vmem:[#allocation4 + $0x1b8] sm:$0xff]
    %v337 = vld [vmem:[#allocation4 + $0x1c0] sm:$0xff]
    %v338 = vld [vmem:[#allocation4 + $0x1c8] sm:$0xff]
    %v339 = vld [vmem:[#allocation4 + $0x1d0] sm:$0xff]
    %v340 = vld [vmem:[#allocation4 + $0x1d8] sm:$0xff]
    %v341 = vld [vmem:[#allocation4 + $0x1e0] sm:$0xff]
    %v342 = vld [vmem:[#allocation4 + $0x1e8] sm:$0xff]
    %v343 = vld [vmem:[#allocation4 + $0x1f0] sm:$0xff]
    %v344 = vld [vmem:[#allocation4 + $0x1f8] sm:$0xff]
    %v345 = vld [vmem:[%s7] sm:$0xf]
    %v347 = vlaneseq
    %v348 = vshrl.u32 %v347, 7
    %v349 = vsub.s32 0, %v348
    %v350 = vrot.slane %v345, %v349
    %v351 = vlaneseq
    %v352 = vshrl.u32 %v351, 7
    %v353 = vsub.s32 1, %v352
    %v354 = vrot.slane %v345, %v353
    %v355 = vlaneseq
    %v356 = vshrl.u32 %v355, 7
    %v357 = vsub.s32 2, %v356
    %v358 = vrot.slane %v345, %v357
    %v359 = vlaneseq
    %v360 = vshrl.u32 %v359, 7
    %v361 = vsub.s32 3, %v360
    %v362 = vrot.slane %v345, %v361
    %367 = vmatprep.subr.mxu0 %v342
    %368 = vmatpush1.msra.mxu0 %v341
    %369 = vmatprep.subr.mxu0 %v338
    %370 = vmatpush1.msra.mxu0 %v337
    %371 = vmatprep.subr.mxu0 %v334
    %372 = vmatpush1.msra.mxu0 %v333
    %373 = vmatprep.subr.mxu0 %v330
    %374 = vmatpush1.msra.mxu0 %v329
    %375 = vmatprep.subr.mxu0 %v326
    %376 = vmatpush1.msra.mxu0 %v325
    %377 = vmatprep.subr.mxu0 %v322
    %378 = vmatpush1.msra.mxu0 %v321
    %379 = vmatprep.subr.mxu0 %v318
    %380 = vmatpush1.msra.mxu0 %v317
    %381 = vmatprep.subr.mxu0 %v314
    %382 = vmatpush1.msra.mxu0 %v313
    %383 = vmatprep.subr.mxu0 %v310
    %384 = vmatpush1.msra.mxu0 %v309
    %385 = vmatprep.subr.mxu0 %v306
    %386 = vmatpush1.msra.mxu0 %v305
    %387 = vmatprep.subr.mxu0 %v302
    %388 = vmatpush1.msra.mxu0 %v301
    %389 = vmatprep.subr.mxu0 %v298
    %390 = vmatpush1.msra.mxu0 %v297
    %391 = vmatprep.subr.mxu0 %v294
    %392 = vmatpush1.msra.mxu0 %v293
    %393 = vmatprep.subr.mxu0 %v290
    %394 = vmatpush1.msra.mxu0 %v289
    %395 = vmatprep.subr.mxu0 %v286
    %396 = vmatpush1.msra.mxu0 %v285
    %397 = vmatprep.subr.mxu0 %v282
    %398 = vmatpush1.msra.mxu0 %v281
    %399 = vmatprep.subr.mxu0 0.0
    %400 = vmatpush2.msra.mxu0 0.0
    %401 = vmatprep.subr.mxu0 0.0
    %402 = vmatpush2.msra.mxu0 0.0
    %403 = vmatprep.subr.mxu0 0.0
    %404 = vmatpush2.msra.mxu0 0.0
    %405 = vmatprep.subr.mxu0 0.0
    %406 = vmatpush2.msra.mxu0 0.0
    %407 = vmatprep.subr.mxu0 0.0
    %408 = vmatpush2.msra.mxu0 0.0
    %409 = vmatprep.subr.mxu0 0.0
    %410 = vmatpush2.msra.mxu0 0.0
    %411 = vmatprep.subr.mxu0 0.0
    %412 = vmatpush2.msra.mxu0 0.0
    %413 = vmatprep.subr.mxu0 0.0
    %414 = vmatpush2.msra.mxu0 0.0
    %415 = vmatprep.subr.mxu0 0.0
    %416 = vmatpush2.msra.mxu0 0.0
    %417 = vmatprep.subr.mxu0 0.0
    %418 = vmatpush2.msra.mxu0 0.0
    %419 = vmatprep.subr.mxu0 0.0
    %420 = vmatpush2.msra.mxu0 0.0
    %421 = vmatprep.subr.mxu0 0.0
    %422 = vmatpush2.msra.mxu0 0.0
    %423 = vmatprep.subr.mxu0 0.0
    %424 = vmatpush2.msra.mxu0 0.0
    %425 = vmatprep.subr.mxu0 0.0
    %426 = vmatpush2.msra.mxu0 0.0
    %427 = vmatprep.subr.mxu0 0.0
    %428 = vmatpush2.msra.mxu0 0.0
    %429 = vmatprep.subr.mxu0 0.0
    %430 = vmatpush2.msra.mxu0 0.0
    %431 = vmatprep.mubr.f32.mxu0 0.0
    %432 = vmatmul.mubr.f32.gmra.mxu0 %v280
    %v433 = vpop.f32.mrf.mxu0
    %v434 = vadd.f32 %v350, %v433
    %v435 = vpop.f32.mrf.mxu0
    %v436 = vadd.f32 %v354, %v435
    %437 = vdwg.mxu0
    %438 = vmatprep.subr.mxu0 %v344
    %439 = vmatpush1.msra.mxu0 %v343
    %440 = vmatprep.subr.mxu0 %v340
    %441 = vmatpush1.msra.mxu0 %v339
    %442 = vmatprep.subr.mxu0 %v336
    %443 = vmatpush1.msra.mxu0 %v335
    %444 = vmatprep.subr.mxu0 %v332
    %445 = vmatpush1.msra.mxu0 %v331
    %446 = vmatprep.subr.mxu0 %v328
    %447 = vmatpush1.msra.mxu0 %v327
    %448 = vmatprep.subr.mxu0 %v324
    %449 = vmatpush1.msra.mxu0 %v323
    %450 = vmatprep.subr.mxu0 %v320
    %451 = vmatpush1.msra.mxu0 %v319
    %452 = vmatprep.subr.mxu0 %v316
    %453 = vmatpush1.msra.mxu0 %v315
    %454 = vmatprep.subr.mxu0 %v312
    %455 = vmatpush1.msra.mxu0 %v311
    %456 = vmatprep.subr.mxu0 %v308
    %457 = vmatpush1.msra.mxu0 %v307
    %458 = vmatprep.subr.mxu0 %v304
    %459 = vmatpush1.msra.mxu0 %v303
    %460 = vmatprep.subr.mxu0 %v300
    %461 = vmatpush1.msra.mxu0 %v299
    %462 = vmatprep.subr.mxu0 %v296
    %463 = vmatpush1.msra.mxu0 %v295
    %464 = vmatprep.subr.mxu0 %v292
    %465 = vmatpush1.msra.mxu0 %v291
    %466 = vmatprep.subr.mxu0 %v288
    %467 = vmatpush1.msra.mxu0 %v287
    %468 = vmatprep.subr.mxu0 %v284
    %469 = vmatpush1.msra.mxu0 %v283
    %470 = vmatprep.subr.mxu0 0.0
    %471 = vmatpush2.msra.mxu0 0.0
    %472 = vmatprep.subr.mxu0 0.0
    %473 = vmatpush2.msra.mxu0 0.0
    %474 = vmatprep.subr.mxu0 0.0
    %475 = vmatpush2.msra.mxu0 0.0
    %476 = vmatprep.subr.mxu0 0.0
    %477 = vmatpush2.msra.mxu0 0.0
    %478 = vmatprep.subr.mxu0 0.0
    %479 = vmatpush2.msra.mxu0 0.0
    %480 = vmatprep.subr.mxu0 0.0
    %481 = vmatpush2.msra.mxu0 0.0
    %482 = vmatprep.subr.mxu0 0.0
    %483 = vmatpush2.msra.mxu0 0.0
    %484 = vmatprep.subr.mxu0 0.0
    %485 = vmatpush2.msra.mxu0 0.0
    %486 = vmatprep.subr.mxu0 0.0
    %487 = vmatpush2.msra.mxu0 0.0
    %488 = vmatprep.subr.mxu0 0.0
    %489 = vmatpush2.msra.mxu0 0.0
    %490 = vmatprep.subr.mxu0 0.0
    %491 = vmatpush2.msra.mxu0 0.0
    %492 = vmatprep.subr.mxu0 0.0
    %493 = vmatpush2.msra.mxu0 0.0
    %494 = vmatprep.subr.mxu0 0.0
    %495 = vmatpush2.msra.mxu0 0.0
    %496 = vmatprep.subr.mxu0 0.0
    %497 = vmatpush2.msra.mxu0 0.0
    %498 = vmatprep.subr.mxu0 0.0
    %499 = vmatpush2.msra.mxu0 0.0
    %500 = vmatprep.subr.mxu0 0.0
    %501 = vmatpush2.msra.mxu0 0.0
    %502 = vmatprep.mubr.f32.mxu0 0.0
    %503 = vmatmul.mubr.f32.gmra.mxu0 %v280
    %v504 = vpop.f32.mrf.mxu0
    %v505 = vadd.f32 %v358, %v504
    %v506 = vpop.f32.mrf.mxu0
    %v507 = vadd.f32 %v362, %v506
    %508 = vdwg.mxu0
    %v509 = vmax.f32 %v434, 0.0
    %v510 = vmax.f32 %v436, 0.0
    %v511 = vmax.f32 %v505, 0.0
    %v512 = vmax.f32 %v507, 0.0
    %v513 = vld [vmem:[#allocation6] sm:$0xff]
    %v514 = vld [vmem:[#allocation6 + $0x8] sm:$0xff]
    %v515 = vld [vmem:[#allocation6 + $0x10] sm:$0xff]
    %v516 = vld [vmem:[#allocation6 + $0x18] sm:$0xff]
    %v517 = vld [vmem:[#allocation6 + $0x20] sm:$0xff]
    %v518 = vld [vmem:[#allocation6 + $0x28] sm:$0xff]
    %v519 = vld [vmem:[#allocation6 + $0x30] sm:$0xff]
    %v520 = vld [vmem:[#allocation6 + $0x38] sm:$0xff]
    %v521 = vld [vmem:[#allocation6 + $0x40] sm:$0xff]
    %v522 = vld [vmem:[#allocation6 + $0x48] sm:$0xff]
    %v523 = vld [vmem:[#allocation6 + $0x50] sm:$0xff]
    %v524 = vld [vmem:[#allocation6 + $0x58] sm:$0xff]
    %v525 = vld [vmem:[#allocation6 + $0x60] sm:$0xff]
    %v526 = vld [vmem:[#allocation6 + $0x68] sm:$0xff]
    %v527 = vld [vmem:[#allocation6 + $0x70] sm:$0xff]
    %v528 = vld [vmem:[#allocation6 + $0x78] sm:$0xff]
    %v529 = vld [vmem:[#allocation6 + $0x80] sm:$0xff]
    %v530 = vld [vmem:[#allocation6 + $0x88] sm:$0xff]
    %v531 = vld [vmem:[#allocation6 + $0x90] sm:$0xff]
    %v532 = vld [vmem:[#allocation6 + $0x98] sm:$0xff]
    %v533 = vld [vmem:[#allocation6 + $0xa0] sm:$0xff]
    %v534 = vld [vmem:[#allocation6 + $0xa8] sm:$0xff]
    %v535 = vld [vmem:[#allocation6 + $0xb0] sm:$0xff]
    %v536 = vld [vmem:[#allocation6 + $0xb8] sm:$0xff]
    %v537 = vld [vmem:[#allocation6 + $0xc0] sm:$0xff]
    %v538 = vld [vmem:[#allocation6 + $0xc8] sm:$0xff]
    %v539 = vld [vmem:[#allocation6 + $0xd0] sm:$0xff]
    %v540 = vld [vmem:[#allocation6 + $0xd8] sm:$0xff]
    %v541 = vld [vmem:[#allocation6 + $0xe0] sm:$0xff]
    %v542 = vld [vmem:[#allocation6 + $0xe8] sm:$0xff]
    %v543 = vld [vmem:[#allocation6 + $0xf0] sm:$0xff]
    %v544 = vld [vmem:[#allocation6 + $0xf8] sm:$0xff]
    %v545 = vld [vmem:[#allocation6 + $0x100] sm:$0xff]
    %v546 = vld [vmem:[#allocation6 + $0x108] sm:$0xff]
    %v547 = vld [vmem:[#allocation6 + $0x110] sm:$0xff]
    %v548 = vld [vmem:[#allocation6 + $0x118] sm:$0xff]
    %v549 = vld [vmem:[#allocation6 + $0x120] sm:$0xff]
    %v550 = vld [vmem:[#allocation6 + $0x128] sm:$0xff]
    %v551 = vld [vmem:[#allocation6 + $0x130] sm:$0xff]
    %v552 = vld [vmem:[#allocation6 + $0x138] sm:$0xff]
    %v553 = vld [vmem:[#allocation6 + $0x140] sm:$0xff]
    %v554 = vld [vmem:[#allocation6 + $0x148] sm:$0xff]
    %v555 = vld [vmem:[#allocation6 + $0x150] sm:$0xff]
    %v556 = vld [vmem:[#allocation6 + $0x158] sm:$0xff]
    %v557 = vld [vmem:[#allocation6 + $0x160] sm:$0xff]
    %v558 = vld [vmem:[#allocation6 + $0x168] sm:$0xff]
    %v559 = vld [vmem:[#allocation6 + $0x170] sm:$0xff]
    %v560 = vld [vmem:[#allocation6 + $0x178] sm:$0xff]
    %v561 = vld [vmem:[#allocation6 + $0x180] sm:$0xff]
    %v562 = vld [vmem:[#allocation6 + $0x188] sm:$0xff]
    %v563 = vld [vmem:[#allocation6 + $0x190] sm:$0xff]
    %v564 = vld [vmem:[#allocation6 + $0x198] sm:$0xff]
    %v565 = vld [vmem:[#allocation6 + $0x1a0] sm:$0xff]
    %v566 = vld [vmem:[#allocation6 + $0x1a8] sm:$0xff]
    %v567 = vld [vmem:[#allocation6 + $0x1b0] sm:$0xff]
    %v568 = vld [vmem:[#allocation6 + $0x1b8] sm:$0xff]
    %v569 = vld [vmem:[#allocation6 + $0x1c0] sm:$0xff]
    %v570 = vld [vmem:[#allocation6 + $0x1c8] sm:$0xff]
    %v571 = vld [vmem:[#allocation6 + $0x1d0] sm:$0xff]
    %v572 = vld [vmem:[#allocation6 + $0x1d8] sm:$0xff]
    %v573 = vld [vmem:[#allocation6 + $0x1e0] sm:$0xff]
    %v574 = vld [vmem:[#allocation6 + $0x1e8] sm:$0xff]
    %v575 = vld [vmem:[#allocation6 + $0x1f0] sm:$0xff]
    %v576 = vld [vmem:[#allocation6 + $0x1f8] sm:$0xff]
    %v577 = vld [vmem:[#allocation6 + $0x200] sm:$0xff]
    %v578 = vld [vmem:[#allocation6 + $0x208] sm:$0xff]
    %v579 = vld [vmem:[#allocation6 + $0x210] sm:$0xff]
    %v580 = vld [vmem:[#allocation6 + $0x218] sm:$0xff]
    %v581 = vld [vmem:[#allocation6 + $0x220] sm:$0xff]
    %v582 = vld [vmem:[#allocation6 + $0x228] sm:$0xff]
    %v583 = vld [vmem:[#allocation6 + $0x230] sm:$0xff]
    %v584 = vld [vmem:[#allocation6 + $0x238] sm:$0xff]
    %v585 = vld [vmem:[#allocation6 + $0x240] sm:$0xff]
    %v586 = vld [vmem:[#allocation6 + $0x248] sm:$0xff]
    %v587 = vld [vmem:[#allocation6 + $0x250] sm:$0xff]
    %v588 = vld [vmem:[#allocation6 + $0x258] sm:$0xff]
    %v589 = vld [vmem:[#allocation6 + $0x260] sm:$0xff]
    %v590 = vld [vmem:[#allocation6 + $0x268] sm:$0xff]
    %v591 = vld [vmem:[#allocation6 + $0x270] sm:$0xff]
    %v592 = vld [vmem:[#allocation6 + $0x278] sm:$0xff]
    %v593 = vld [vmem:[#allocation6 + $0x280] sm:$0xff]
    %v594 = vld [vmem:[#allocation6 + $0x288] sm:$0xff]
    %v595 = vld [vmem:[#allocation6 + $0x290] sm:$0xff]
    %v596 = vld [vmem:[#allocation6 + $0x298] sm:$0xff]
    %v597 = vld [vmem:[#allocation6 + $0x2a0] sm:$0xff]
    %v598 = vld [vmem:[#allocation6 + $0x2a8] sm:$0xff]
    %v599 = vld [vmem:[#allocation6 + $0x2b0] sm:$0xff]
    %v600 = vld [vmem:[#allocation6 + $0x2b8] sm:$0xff]
    %v601 = vld [vmem:[#allocation6 + $0x2c0] sm:$0xff]
    %v602 = vld [vmem:[#allocation6 + $0x2c8] sm:$0xff]
    %v603 = vld [vmem:[#allocation6 + $0x2d0] sm:$0xff]
    %v604 = vld [vmem:[#allocation6 + $0x2d8] sm:$0xff]
    %v605 = vld [vmem:[#allocation6 + $0x2e0] sm:$0xff]
    %v606 = vld [vmem:[#allocation6 + $0x2e8] sm:$0xff]
    %v607 = vld [vmem:[#allocation6 + $0x2f0] sm:$0xff]
    %v608 = vld [vmem:[#allocation6 + $0x2f8] sm:$0xff]
    %v609 = vld [vmem:[#allocation6 + $0x300] sm:$0xff]
    %v610 = vld [vmem:[#allocation6 + $0x308] sm:$0xff]
    %v611 = vld [vmem:[#allocation6 + $0x310] sm:$0xff]
    %v612 = vld [vmem:[#allocation6 + $0x318] sm:$0xff]
    %v613 = vld [vmem:[#allocation6 + $0x320] sm:$0xff]
    %v614 = vld [vmem:[#allocation6 + $0x328] sm:$0xff]
    %v615 = vld [vmem:[#allocation6 + $0x330] sm:$0xff]
    %v616 = vld [vmem:[#allocation6 + $0x338] sm:$0xff]
    %v617 = vld [vmem:[#allocation6 + $0x340] sm:$0xff]
    %v618 = vld [vmem:[#allocation6 + $0x348] sm:$0xff]
    %v619 = vld [vmem:[#allocation6 + $0x350] sm:$0xff]
    %v620 = vld [vmem:[#allocation6 + $0x358] sm:$0xff]
    %v621 = vld [vmem:[#allocation6 + $0x360] sm:$0xff]
    %v622 = vld [vmem:[#allocation6 + $0x368] sm:$0xff]
    %v623 = vld [vmem:[#allocation6 + $0x370] sm:$0xff]
    %v624 = vld [vmem:[#allocation6 + $0x378] sm:$0xff]
    %v625 = vld [vmem:[#allocation6 + $0x380] sm:$0xff]
    %v626 = vld [vmem:[#allocation6 + $0x388] sm:$0xff]
    %v627 = vld [vmem:[#allocation6 + $0x390] sm:$0xff]
    %v628 = vld [vmem:[#allocation6 + $0x398] sm:$0xff]
    %v629 = vld [vmem:[#allocation6 + $0x3a0] sm:$0xff]
    %v630 = vld [vmem:[#allocation6 + $0x3a8] sm:$0xff]
    %v631 = vld [vmem:[#allocation6 + $0x3b0] sm:$0xff]
    %v632 = vld [vmem:[#allocation6 + $0x3b8] sm:$0xff]
    %v633 = vld [vmem:[#allocation6 + $0x3c0] sm:$0xff]
    %v634 = vld [vmem:[#allocation6 + $0x3c8] sm:$0xff]
    %v635 = vld [vmem:[#allocation6 + $0x3d0] sm:$0xff]
    %v636 = vld [vmem:[#allocation6 + $0x3d8] sm:$0xff]
    %v637 = vld [vmem:[#allocation6 + $0x3e0] sm:$0xff]
    %v638 = vld [vmem:[#allocation6 + $0x3e8] sm:$0xff]
    %v639 = vld [vmem:[#allocation6 + $0x3f0] sm:$0xff]
    %v640 = vld [vmem:[#allocation6 + $0x3f8] sm:$0xff]
    %v641 = vld [vmem:[%s9] sm:$0x3]
    %v643 = vlaneseq
    %v644 = vshrl.u32 %v643, 7
    %v645 = vsub.s32 0, %v644
    %v646 = vrot.slane %v641, %v645
    %v647 = vlaneseq
    %v648 = vshrl.u32 %v647, 7
    %v649 = vsub.s32 1, %v648
    %v650 = vrot.slane %v641, %v649
    %653 = vmatprep.subr.mxu0 %v544
    %654 = vmatpush1.msra.mxu0 %v543
    %655 = vmatprep.subr.mxu0 %v542
    %656 = vmatpush1.msra.mxu0 %v541
    %657 = vmatprep.subr.mxu0 %v540
    %658 = vmatpush1.msra.mxu0 %v539
    %659 = vmatprep.subr.mxu0 %v538
    %660 = vmatpush1.msra.mxu0 %v537
    %661 = vmatprep.subr.mxu0 %v536
    %662 = vmatpush1.msra.mxu0 %v535
    %663 = vmatprep.subr.mxu0 %v534
    %664 = vmatpush1.msra.mxu0 %v533
    %665 = vmatprep.subr.mxu0 %v532
    %666 = vmatpush1.msra.mxu0 %v531
    %667 = vmatprep.subr.mxu0 %v530
    %668 = vmatpush1.msra.mxu0 %v529
    %669 = vmatprep.subr.mxu0 %v528
    %670 = vmatpush1.msra.mxu0 %v527
    %671 = vmatprep.subr.mxu0 %v526
    %672 = vmatpush1.msra.mxu0 %v525
    %673 = vmatprep.subr.mxu0 %v524
    %674 = vmatpush1.msra.mxu0 %v523
    %675 = vmatprep.subr.mxu0 %v522
    %676 = vmatpush1.msra.mxu0 %v521
    %677 = vmatprep.subr.mxu0 %v520
    %678 = vmatpush1.msra.mxu0 %v519
    %679 = vmatprep.subr.mxu0 %v518
    %680 = vmatpush1.msra.mxu0 %v517
    %681 = vmatprep.subr.mxu0 %v516
    %682 = vmatpush1.msra.mxu0 %v515
    %683 = vmatprep.subr.mxu0 %v514
    %684 = vmatpush1.msra.mxu0 %v513
    %685 = vmatprep.subr.mxu0 %v576
    %686 = vmatpush2.msra.mxu0 %v575
    %687 = vmatprep.subr.mxu0 %v574
    %688 = vmatpush2.msra.mxu0 %v573
    %689 = vmatprep.subr.mxu0 %v572
    %690 = vmatpush2.msra.mxu0 %v571
    %691 = vmatprep.subr.mxu0 %v570
    %692 = vmatpush2.msra.mxu0 %v569
    %693 = vmatprep.subr.mxu0 %v568
    %694 = vmatpush2.msra.mxu0 %v567
    %695 = vmatprep.subr.mxu0 %v566
    %696 = vmatpush2.msra.mxu0 %v565
    %697 = vmatprep.subr.mxu0 %v564
    %698 = vmatpush2.msra.mxu0 %v563
    %699 = vmatprep.subr.mxu0 %v562
    %700 = vmatpush2.msra.mxu0 %v561
    %701 = vmatprep.subr.mxu0 %v560
    %702 = vmatpush2.msra.mxu0 %v559
    %703 = vmatprep.subr.mxu0 %v558
    %704 = vmatpush2.msra.mxu0 %v557
    %705 = vmatprep.subr.mxu0 %v556
    %706 = vmatpush2.msra.mxu0 %v555
    %707 = vmatprep.subr.mxu0 %v554
    %708 = vmatpush2.msra.mxu0 %v553
    %709 = vmatprep.subr.mxu0 %v552
    %710 = vmatpush2.msra.mxu0 %v551
    %711 = vmatprep.subr.mxu0 %v550
    %712 = vmatpush2.msra.mxu0 %v549
    %713 = vmatprep.subr.mxu0 %v548
    %714 = vmatpush2.msra.mxu0 %v547
    %715 = vmatprep.subr.mxu0 %v546
    %716 = vmatpush2.msra.mxu0 %v545
    %717 = vmatprep.mubr.f32.mxu0 %v510
    %718 = vmatmul.mubr.f32.gmra.mxu0 %v509
    %v719 = vpop.f32.mrf.mxu0
    %v720 = vadd.f32 %v646, %v719
    %v721 = vpop.f32.mrf.mxu0
    %v722 = vadd.f32 %v650, %v721
    %723 = vdwg.mxu0
    %724 = vmatprep.subr.mxu0 %v608
    %725 = vmatpush1.msra.mxu0 %v607
    %726 = vmatprep.subr.mxu0 %v606
    %727 = vmatpush1.msra.mxu0 %v605
    %728 = vmatprep.subr.mxu0 %v604
    %729 = vmatpush1.msra.mxu0 %v603
    %730 = vmatprep.subr.mxu0 %v602
    %731 = vmatpush1.msra.mxu0 %v601
    %732 = vmatprep.subr.mxu0 %v600
    %733 = vmatpush1.msra.mxu0 %v599
    %734 = vmatprep.subr.mxu0 %v598
    %735 = vmatpush1.msra.mxu0 %v597
    %736 = vmatprep.subr.mxu0 %v596
    %737 = vmatpush1.msra.mxu0 %v595
    %738 = vmatprep.subr.mxu0 %v594
    %739 = vmatpush1.msra.mxu0 %v593
    %740 = vmatprep.subr.mxu0 %v592
    %741 = vmatpush1.msra.mxu0 %v591
    %742 = vmatprep.subr.mxu0 %v590
    %743 = vmatpush1.msra.mxu0 %v589
    %744 = vmatprep.subr.mxu0 %v588
    %745 = vmatpush1.msra.mxu0 %v587
    %746 = vmatprep.subr.mxu0 %v586
    %747 = vmatpush1.msra.mxu0 %v585
    %748 = vmatprep.subr.mxu0 %v584
    %749 = vmatpush1.msra.mxu0 %v583
    %750 = vmatprep.subr.mxu0 %v582
    %751 = vmatpush1.msra.mxu0 %v581
    %752 = vmatprep.subr.mxu0 %v580
    %753 = vmatpush1.msra.mxu0 %v579
    %754 = vmatprep.subr.mxu0 %v578
    %755 = vmatpush1.msra.mxu0 %v577
    %756 = vmatprep.subr.mxu0 %v640
    %757 = vmatpush2.msra.mxu0 %v639
    %758 = vmatprep.subr.mxu0 %v638
    %759 = vmatpush2.msra.mxu0 %v637
    %760 = vmatprep.subr.mxu0 %v636
    %761 = vmatpush2.msra.mxu0 %v635
    %762 = vmatprep.subr.mxu0 %v634
    %763 = vmatpush2.msra.mxu0 %v633
    %764 = vmatprep.subr.mxu0 %v632
    %765 = vmatpush2.msra.mxu0 %v631
    %766 = vmatprep.subr.mxu0 %v630
    %767 = vmatpush2.msra.mxu0 %v629
    %768 = vmatprep.subr.mxu0 %v628
    %769 = vmatpush2.msra.mxu0 %v627
    %770 = vmatprep.subr.mxu0 %v626
    %771 = vmatpush2.msra.mxu0 %v625
    %772 = vmatprep.subr.mxu0 %v624
    %773 = vmatpush2.msra.mxu0 %v623
    %774 = vmatprep.subr.mxu0 %v622
    %775 = vmatpush2.msra.mxu0 %v621
    %776 = vmatprep.subr.mxu0 %v620
    %777 = vmatpush2.msra.mxu0 %v619
    %778 = vmatprep.subr.mxu0 %v618
    %779 = vmatpush2.msra.mxu0 %v617
    %780 = vmatprep.subr.mxu0 %v616
    %781 = vmatpush2.msra.mxu0 %v615
    %782 = vmatprep.subr.mxu0 %v614
    %783 = vmatpush2.msra.mxu0 %v613
    %784 = vmatprep.subr.mxu0 %v612
    %785 = vmatpush2.msra.mxu0 %v611
    %786 = vmatprep.subr.mxu0 %v610
    %787 = vmatpush2.msra.mxu0 %v609
    %788 = vmatprep.mubr.f32.mxu0 %v512
    %789 = vmatmul.mubr.f32.gmra.mxu0 %v511
    %v790 = vpop.f32.mrf.mxu0
    %v791 = vadd.f32 %v720, %v790
    %v792 = vpop.f32.mrf.mxu0
    %v793 = vadd.f32 %v722, %v792
    %794 = vdwg.mxu0
    %795 = vst [vmem:[%s10] sm:$0xff] %v791
    %796 = vst [vmem:[%s10 + $0x8] sm:$0xff] %v793
    // Predicated region
    $region54: #{tab_neutral_ad.1} parent=1 // pred_check
      _
    $region55: #{tab_neutral_ad.1} parent=1 // pred_check_branch
      %798 = sbr.rel (0) target = $region57
    $region56: #{tab_neutral_ad.1} parent=1 // pred_region
      _
    $region57: #{tab_neutral_ad.1} parent=1 // pred_fallthru
      _
    // Predicated region
    $region58: #{tab_neutral_ad.1} parent=1 // pred_check
      _
    $region59: #{tab_neutral_ad.1} parent=1 // pred_check_branch
      %800 = sbr.rel (0) target = $region61
    $region60: #{tab_neutral_ad.1} parent=1 // pred_region
      _
    $region61: #{tab_neutral_ad.1} parent=1 // pred_fallthru
      _
    %801 = vsyncpa [#allocation3], 1
    %802 = vsyncpa [#allocation5], 1

</llo_original>
